<compile_context>
chip_gen: v7x
topology: tpu7x:2x2x1
jax: 0.10.0
libtpu: 0.0.40
codegen_flags: <defaults>
</compile_context>

<pallas_src>
import jax
import jax.numpy as jnp
from jax.experimental import pallas as pl
from jax.experimental.pallas import tpu as pltpu


def _round_up(x, m):
    return (x + m - 1) // m * m


# ----------------------------------------------------------------------------
# Kernel 1: small conditioned MLP, computed once per batch tile.
# ----------------------------------------------------------------------------
def _mlp_kernel(x_ref, w1_ref, b1_ref, w2_ref, b2_ref, y_ref):
    x = x_ref[...].astype(jnp.bfloat16)                                   # (TB, D)
    h = jnp.dot(x, w1_ref[...], preferred_element_type=jnp.float32)      # (TB, H) f32
    h = jnp.maximum(h + b1_ref[...], 0.0)                                 # bias + ReLU (f32)
    y = jnp.dot(h.astype(jnp.bfloat16), w2_ref[...],
                preferred_element_type=jnp.float32)                       # (TB, D) f32
    y_ref[...] = (y + b2_ref[...]).astype(jnp.bfloat16)                   # cache bf16


# ----------------------------------------------------------------------------
# Kernel 2: lm_head logits, vocab-tiled weight stream.
# Grid = (vocab tiles v [outer, parallel], batch tiles b [inner, parallel]).
# The first vocab tile owns the 4 leading -inf columns (weight columns there are
# zero-padded, we overwrite with -inf via a single where on that tile only).
# ----------------------------------------------------------------------------
def _lm_head_kernel(y_ref, wlm_ref, o_ref):
    acc = jnp.dot(y_ref[...], wlm_ref[...],
                  preferred_element_type=jnp.float32)                     # (TB, TV) f32

    @pl.when(pl.program_id(0) == 0)
    def _():
        col = jax.lax.broadcasted_iota(jnp.int32, acc.shape, 1)
        o_ref[...] = jnp.where(col < 4, -jnp.inf, acc)

    @pl.when(pl.program_id(0) != 0)
    def _():
        o_ref[...] = acc


# ----------------------------------------------------------------------------
# One-time parameter setup (hoisted out of the hot path).
# ----------------------------------------------------------------------------
def prepare_params(w1, b1, w2, b2, w_lm, *, tv=2048):
    """Casts weights to bf16, prepends 4 zero columns to the lm_head weight
    (they become the -inf prefix), pads the vocab axis to a multiple of the
    vocab tile, and pre-blocks the weight into (nV, D, tv) contiguous tiles so
    each streamed tile is one long linear DMA."""
    D, H = w1.shape
    V = w_lm.shape[1]
    assert tv % 128 == 0
    v_tot = V + 4                                    # logical output width (V + 4 prefix)
    tv = min(tv, _round_up(v_tot, 128))              # don't over-tile tiny vocabs
    v_pad = _round_up(v_tot, tv)
    n_v = v_pad // tv

    wlm_flat = jnp.zeros((D, v_pad), jnp.bfloat16).at[:, 4:4 + V].set(
        w_lm.astype(jnp.bfloat16))
    # (D, v_pad) -> (nV, D, tv): tile j is wlm_flat[:, j*tv:(j+1)*tv], contiguous.
    wlm_blocked = wlm_flat.reshape(D, n_v, tv).transpose(1, 0, 2)

    return {
        "w1": w1.astype(jnp.bfloat16),               # (D, H) bf16
        "b1": b1.reshape(1, H).astype(jnp.float32),  # (1, H) f32
        "w2": w2.astype(jnp.bfloat16),               # (H, D) bf16
        "b2": b2.reshape(1, D).astype(jnp.float32),  # (1, D) f32
        "w_lm": wlm_blocked,                         # (nV, D, tv) bf16, contiguous tiles
        "V": V,
        "v_tot": v_tot,
        "tv": tv,
        "n_v": n_v,
    }


def _vmem_limit(need_bytes):
    # Generous headroom over the estimated working set; well under every
    # generation's physical VMEM (v7x: 64 MiB/TC) but above v5e's 16 MiB default.
    return int(min(max(need_bytes + (16 << 20), 32 << 20), 56 << 20))


# ----------------------------------------------------------------------------
# Forward: state (B, D) f32  ->  modified_logits (B, V + 4) f32
# ----------------------------------------------------------------------------
def gpt2_conditioned_mlp_forward(state, params):
    B, D = state.shape
    w1, b1, w2, b2, w_lm = (params["w1"], params["b1"], params["w2"],
                            params["b2"], params["w_lm"])
    H = w1.shape[1]
    v_tot, tv, n_v = params["v_tot"], params["tv"], params["n_v"]

    # Batch tiling (pad to a sublane-aligned tile instead of asserting).
    tb = min(_round_up(B, 8), 128)
    Bp = _round_up(B, tb)
    x = state if Bp == B else jnp.pad(state, ((0, Bp - B), (0, 0)))
    n_b = Bp // tb

    # ---- kernel 1: y = ReLU(x@W1+b1)@W2+b2 ---------------------------------
    mlp_need = (D * H * 2 + H * 4 + H * D * 2 + D * 4   # single-buffered residents
                + 2 * tb * D * 4                        # x tiles (double-buffered)
                + 2 * tb * D * 2)                       # y tiles
    y = pl.pallas_call(
        _mlp_kernel,
        out_shape=jax.ShapeDtypeStruct((Bp, D), jnp.bfloat16),
        grid_spec=pltpu.PrefetchScalarGridSpec(
            num_scalar_prefetch=0,
            grid=(n_b,),
            in_specs=[
                pl.BlockSpec((tb, D), lambda i: (i, 0)),        # state tile
                pl.BlockSpec((D, H), lambda i: (0, 0),
                             pipeline_mode=pl.Buffered(1)),     # W1 resident, single buffer
                pl.BlockSpec((1, H), lambda i: (0, 0),
                             pipeline_mode=pl.Buffered(1)),     # b1
                pl.BlockSpec((H, D), lambda i: (0, 0),
                             pipeline_mode=pl.Buffered(1)),     # W2
                pl.BlockSpec((1, D), lambda i: (0, 0),
                             pipeline_mode=pl.Buffered(1)),     # b2
            ],
            out_specs=pl.BlockSpec((tb, D), lambda i: (i, 0)),
        ),
        compiler_params=pltpu.CompilerParams(
            dimension_semantics=("parallel",),
            vmem_limit_bytes=_vmem_limit(mlp_need)),
    )(x, w1, b1, w2, b2)

    # ---- kernel 2: logits = y @ W_lm, vocab axis outer & parallel ----------
    W_LM_BUFFERS = 3
    lm_need = (W_LM_BUFFERS * D * tv * 2                # streamed weight tiles
               + 2 * tb * D * 2                         # y tiles
               + 2 * tb * tv * 4)                       # f32 output tiles
    out = pl.pallas_call(
        _lm_head_kernel,
        out_shape=jax.ShapeDtypeStruct((Bp, v_tot), jnp.float32),
        grid_spec=pltpu.PrefetchScalarGridSpec(
            num_scalar_prefetch=0,
            grid=(n_v, n_b),                            # vocab OUTER -> weight streamed once
            in_specs=[
                pl.BlockSpec((tb, D), lambda v, b: (b, 0)),          # cached y (tiny)
                pl.BlockSpec((None, D, tv), lambda v, b: (v, 0, 0),  # contiguous weight tile
                             pipeline_mode=pl.Buffered(3)),
            ],
            out_specs=pl.BlockSpec((tb, tv), lambda v, b: (b, v)),
        ),
        compiler_params=pltpu.CompilerParams(
            dimension_semantics=("parallel", "parallel"),
            vmem_limit_bytes=_vmem_limit(lm_need)),
    )(y, w_lm)

    return out if Bp == B else out[:B]


# ----------------------------------------------------------------------------
# References & demo
# ----------------------------------------------------------------------------
def _xavier_uniform(key, fan_in, fan_out, gain):
    # matches torch.nn.init.xavier_uniform_ (returned already as (in, out))
    bound = gain * (6.0 / (fan_in + fan_out)) ** 0.5
    return jax.random.uniform(key, (fan_in, fan_out), jnp.float32,
                              minval=-bound, maxval=bound)


def _reference_bf16(state, w1, b1, w2, b2, w_lm):
    """Pure-JAX reference matching the kernels' bf16-operand / f32-accum math."""
    x = state.astype(jnp.bfloat16)
    h = jnp.dot(x, w1.astype(jnp.bfloat16),
                preferred_element_type=jnp.float32) + b1.reshape(1, -1)
    h = jnp.maximum(h, 0.0)
    y = jnp.dot(h.astype(jnp.bfloat16), w2.astype(jnp.bfloat16),
                preferred_element_type=jnp.float32) + b2.reshape(1, -1)
    y = y.astype(jnp.bfloat16)
    logits = jnp.dot(y, w_lm.astype(jnp.bfloat16),
                     preferred_element_type=jnp.float32)
    neg = jnp.full((state.shape[0], 4), -jnp.inf, jnp.float32)
    return jnp.concatenate([neg, logits], axis=-1)


def _reference_f32(state, w1, b1, w2, b2, w_lm):
    """Full-precision reference (mirrors the original f32 PyTorch module)."""
    h = jnp.maximum(jnp.dot(state, w1, precision="highest") + b1, 0.0)
    y = jnp.dot(h, w2, precision="highest") + b2
    logits = jnp.dot(y, w_lm, precision="highest")
    neg = jnp.full((state.shape[0], 4), -jnp.inf, jnp.float32)
    return jnp.concatenate([neg, logits], axis=-1)


if __name__ == "__main__":
    # Small shapes consistent with the module's structure
    # (module: D=768, H=2048, V=gpt2 vocab ~50257; scaled down for the demo.
    #  V+4 deliberately not a multiple of the vocab tile to exercise both the
    #  -inf prefix tile and the partially-masked last vocab tile).
    B, D, H, V = 8, 128, 256, 500

    key = jax.random.PRNGKey(0)
    k_state, k_w1, k_w2, k_lm = jax.random.split(key, 4)

    state = jax.random.normal(k_state, (B, D), jnp.float32)

    # init_weights: xavier_uniform(gain=1e-4) on Linear weights, bias = -1e-4
    w1 = _xavier_uniform(k_w1, D, H, gain=1e-4)
    b1 = jnp.full((H,), -1e-4, jnp.float32)
    w2 = _xavier_uniform(k_w2, H, D, gain=1e-4)
    b2 = jnp.full((D,), -1e-4, jnp.float32)
    # lm_head: frozen pretrained (tied-embedding) weight, no bias -> synthetic init
    w_lm = 0.02 * jax.random.normal(k_lm, (D, V), jnp.float32)

    # One-time parameter setup (bf16 cast, 4-column -inf prefix folded into the
    # padding, contiguous (nV, D, tv) weight tiles), hoisted out of the hot path.
    params = prepare_params(w1, b1, w2, b2, w_lm, tv=256)

    out = gpt2_conditioned_mlp_forward(state, params)
    out = jax.block_until_ready(out)

    assert out.shape == (B, V + 4)
    # first 4 columns are exactly -inf
    assert bool(jnp.all(jnp.isinf(out[:, :4]) & (out[:, :4] < 0)))

    # Tight check vs a reference using the same bf16-operand / f32-accum math.
    ref16 = _reference_bf16(state, w1, b1, w2, b2, w_lm)
    assert bool(jnp.allclose(out[:, 4:], ref16[:, 4:], atol=1e-6, rtol=1e-2))

    # Loose check vs the full-f32 reference (guards against drift from the
    # original f32 PyTorch numerics, per review).
    ref32 = _reference_f32(state, w1, b1, w2, b2, w_lm)
    err = jnp.max(jnp.abs(out[:, 4:] - ref32[:, 4:]))
    tol = 0.05 * jnp.max(jnp.abs(ref32[:, 4:])) + 1e-7
    assert bool(err <= tol), (float(err), float(tol))

    print("KERNEL_OK")
</pallas_src>

<mosaic_0001>
module attributes {stable_mosaic.version = 11 : i64} {
  func.func @_mlp_kernel(%arg0: i32, %arg1: memref<8x128xf32, #tpu.memory_space<vmem>>, %arg2: memref<128x256xbf16, #tpu.memory_space<vmem>>, %arg3: memref<1x256xf32, #tpu.memory_space<vmem>>, %arg4: memref<256x128xbf16, #tpu.memory_space<vmem>>, %arg5: memref<1x128xf32, #tpu.memory_space<vmem>>, %arg6: memref<8x128xbf16, #tpu.memory_space<vmem>>) attributes {dimension_semantics = [#tpu.dimension_semantics<parallel>], iteration_bounds = array<i64: 1>, scalar_prefetch = 0 : i64, scratch_operands = 0 : i64, tpu.core_type = #tpu.core_type<tc>, window_params = [{transform_indices = @transform_0, window_bounds = array<i64: 8, 128>}, {pipeline_mode = #tpu.pipeline_mode<synchronous>, transform_indices = @transform_1, window_bounds = array<i64: 128, 256>}, {pipeline_mode = #tpu.pipeline_mode<synchronous>, transform_indices = @transform_2, window_bounds = array<i64: 1, 256>}, {pipeline_mode = #tpu.pipeline_mode<synchronous>, transform_indices = @transform_3, window_bounds = array<i64: 256, 128>}, {pipeline_mode = #tpu.pipeline_mode<synchronous>, transform_indices = @transform_4, window_bounds = array<i64: 1, 128>}, {transform_indices = @transform_5, window_bounds = array<i64: 8, 128>}]} {
    %c0 = arith.constant 0 : index
    %c0_0 = arith.constant 0 : index
    %0 = vector.load %arg1[%c0, %c0_0] : memref<8x128xf32, #tpu.memory_space<vmem>>, vector<8x128xf32>
    %1 = arith.truncf %0 : vector<8x128xf32> to vector<8x128xbf16>
    %c0_1 = arith.constant 0 : index
    %c0_2 = arith.constant 0 : index
    %2 = vector.load %arg2[%c0_1, %c0_2] : memref<128x256xbf16, #tpu.memory_space<vmem>>, vector<128x256xbf16>
    %cst = arith.constant dense<0.000000e+00> : vector<8x256xf32>
    %3 = tpu.matmul %1, %2, %cst {dimension_numbers = #tpu.dot_dimension_numbers<[1], [0], [0], [1], [0, 0, 1, 1], [], []>} : vector<8x128xbf16>, vector<128x256xbf16>, vector<8x256xf32> -> vector<8x256xf32>
    %c0_3 = arith.constant 0 : index
    %c0_4 = arith.constant 0 : index
    %4 = vector.load %arg3[%c0_3, %c0_4] : memref<1x256xf32, #tpu.memory_space<vmem>>, vector<1x256xf32>
    %5 = vector.broadcast %4 : vector<1x256xf32> to vector<8x256xf32>
    %6 = arith.addf %3, %5 : vector<8x256xf32>
    %cst_5 = arith.constant 0.000000e+00 : f32
    %7 = vector.broadcast %cst_5 : f32 to vector<8x256xf32>
    %8 = arith.maximumf %6, %7 : vector<8x256xf32>
    %9 = arith.truncf %8 : vector<8x256xf32> to vector<8x256xbf16>
    %c0_6 = arith.constant 0 : index
    %c0_7 = arith.constant 0 : index
    %10 = vector.load %arg4[%c0_6, %c0_7] : memref<256x128xbf16, #tpu.memory_space<vmem>>, vector<256x128xbf16>
    %cst_8 = arith.constant dense<0.000000e+00> : vector<8x128xf32>
    %11 = tpu.matmul %9, %10, %cst_8 {dimension_numbers = #tpu.dot_dimension_numbers<[1], [0], [0], [1], [0, 0, 1, 1], [], []>} : vector<8x256xbf16>, vector<256x128xbf16>, vector<8x128xf32> -> vector<8x128xf32>
    %c0_9 = arith.constant 0 : index
    %c0_10 = arith.constant 0 : index
    %12 = vector.load %arg5[%c0_9, %c0_10] : memref<1x128xf32, #tpu.memory_space<vmem>>, vector<1x128xf32>
    %13 = vector.broadcast %12 : vector<1x128xf32> to vector<8x128xf32>
    %14 = arith.addf %11, %13 : vector<8x128xf32>
    %15 = arith.truncf %14 : vector<8x128xf32> to vector<8x128xbf16>
    %c0_11 = arith.constant 0 : index
    %c0_12 = arith.constant 0 : index
    %16 = vector.load %arg6[%c0_11, %c0_12] : memref<8x128xbf16, #tpu.memory_space<vmem>>, vector<8x128xbf16>
    tpu.vector_store %arg6[%c0_11, %c0_12], %15 {strides = array<i32>} : memref<8x128xbf16, #tpu.memory_space<vmem>>, vector<8x128xbf16>,
    return
  }
  func.func @transform_0(%arg0: i32) -> (i32, i32) {
    %c0_i32 = arith.constant 0 : i32
    %c0_i32_0 = arith.constant 0 : i32
    return %arg0, %c0_i32 : i32, i32
  }
  func.func @transform_1(%arg0: i32) -> (i32, i32) {
    %c0_i32 = arith.constant 0 : i32
    %c0_i32_0 = arith.constant 0 : i32
    %c0_i32_1 = arith.constant 0 : i32
    return %c0_i32, %c0_i32_0 : i32, i32
  }
  func.func @transform_2(%arg0: i32) -> (i32, i32) {
    %c0_i32 = arith.constant 0 : i32
    %c0_i32_0 = arith.constant 0 : i32
    %c0_i32_1 = arith.constant 0 : i32
    return %c0_i32, %c0_i32_0 : i32, i32
  }
  func.func @transform_3(%arg0: i32) -> (i32, i32) {
    %c0_i32 = arith.constant 0 : i32
    %c0_i32_0 = arith.constant 0 : i32
    %c0_i32_1 = arith.constant 0 : i32
    return %c0_i32, %c0_i32_0 : i32, i32
  }
  func.func @transform_4(%arg0: i32) -> (i32, i32) {
    %c0_i32 = arith.constant 0 : i32
    %c0_i32_0 = arith.constant 0 : i32
    %c0_i32_1 = arith.constant 0 : i32
    return %c0_i32, %c0_i32_0 : i32, i32
  }
  func.func @transform_5(%arg0: i32) -> (i32, i32) {
    %c0_i32 = arith.constant 0 : i32
    %c0_i32_0 = arith.constant 0 : i32
    return %arg0, %c0_i32 : i32, i32
  }
}

</mosaic_0001>

<llo_original>
// kernel: tpu_custom_call.1
$region0: #{tpu_custom_call.1}
  #allocation0 [shape = 'u32[]', space=smem, size = 0x4, offset = 0x4, fixed_abs, tag = 'smem constant byte address 0x4 - core index']
  #allocation1 [shape = 'u32[144,128]{1,0:T(1,128)}', space=vmem, size = 0x12000, scoped, tag = 'internal scratch']
  %s0 = inlined_call_operand.hbm [shape: f32[8,128], index: 0, kind: input, shape index: {}]
  %s1 = inlined_call_operand.hbm [shape: bf16[128,256], index: 1, kind: input, shape index: {}]
  %s2 = inlined_call_operand.vmem [shape: f32[1,256], index: 2, kind: input, shape index: {}]
  %s3 = inlined_call_operand.hbm [shape: bf16[256,128], index: 3, kind: input, shape index: {}]
  %s4 = inlined_call_operand.vmem [shape: f32[1,128], index: 4, kind: input, shape index: {}]
  %s5 = inlined_call_operand.hbm [shape: bf16[8,128], index: 5, kind: output, shape index: {}]
  %s6 = sld [smem:[#allocation0]]
  $region42: #{tpu_custom_call.1} parent=0
    _
  %s8 = ssub.s32 1, %s6
  %s9 = scalar_select 0, %s8, %s6
  $region1: #{tpu_custom_call.1} parent=0
    #allocation2 [shape = 'u8[4096]{0}', space=vmem, size = 0x1000, scoped, tag = 'input window, operand 0, single buffered']
    #allocation3 [shape = 's32[1]{0}', space=sflag, size = 0x4, scoped, tag = 'scoped memory for tpu_custom_call.1']
    #allocation4 [shape = 's32[1]{0}', space=sflag, size = 0x4, scoped, tag = 'scoped memory for tpu_custom_call.1']
    #allocation5 [shape = 'u8[65536]{0}', space=vmem, size = 0x10000, scoped, tag = 'input window, operand 1, single buffered']
    #allocation6 [shape = 's32[1]{0}', space=sflag, size = 0x4, scoped, tag = 'scoped memory for tpu_custom_call.1']
    #allocation7 [shape = 'u8[65536]{0}', space=vmem, size = 0x10000, scoped, tag = 'input window, operand 3, single buffered']
    #allocation8 [shape = 'u8[2048]{0}', space=vmem, size = 0x800, scoped, tag = 'output window, operand 0, single buffered']
    %10 = vsyncpa [#allocation3], 0
    %11 = vsyncpa [#allocation6], 0
    %12 = vsyncpa [#allocation4], 0
    // Predicated region
    $region2: #{tpu_custom_call.1} parent=1 // pred_check
      _
    $region3: #{tpu_custom_call.1} parent=1 // pred_check_branch
      %14 = sbr.rel (0) target = $region5
    $region4: #{tpu_custom_call.1} parent=1 // pred_region
      %s16 = ssub.s32 128, 128
      %17 = vsyncadd [#allocation3], %s16
      %s19 = sshll.u32 [#allocation2], 4
      %s20 = int_to_ptr.vmem [resolvable:$true] %s19
      %22 = dma.hbm_to_vmem [thread:$0]  %s0, 128, %s20, [#allocation3]
    $region5: #{tpu_custom_call.1} parent=1 // pred_fallthru
      _
    // Predicated region
    $region6: #{tpu_custom_call.1} parent=1 // pred_check
      _
    $region7: #{tpu_custom_call.1} parent=1 // pred_check_branch
      %24 = sbr.rel (0) target = $region9
    $region8: #{tpu_custom_call.1} parent=1 // pred_region
      %s26 = ssub.s32 2048, 2048
      %27 = vsyncadd [#allocation6], %s26
      %s28 = sshll.u32 [#allocation5], 4
      %s29 = int_to_ptr.vmem [resolvable:$true] %s28
      %34 = dma.hbm_to_vmem [thread:$0]  %s1, 2048, %s29, [#allocation6], 128, 128, 8
    $region9: #{tpu_custom_call.1} parent=1 // pred_fallthru
      _
    // Predicated region
    $region10: #{tpu_custom_call.1} parent=1 // pred_check
      _
    $region11: #{tpu_custom_call.1} parent=1 // pred_check_branch
      %36 = sbr.rel (0) target = $region13
    $region12: #{tpu_custom_call.1} parent=1 // pred_region
      _
    $region13: #{tpu_custom_call.1} parent=1 // pred_fallthru
      _
    // Predicated region
    $region14: #{tpu_custom_call.1} parent=1 // pred_check
      _
    $region15: #{tpu_custom_call.1} parent=1 // pred_check_branch
      %38 = sbr.rel (0) target = $region17
    $region16: #{tpu_custom_call.1} parent=1 // pred_region
      %s40 = ssub.s32 2048, 2048
      %41 = vsyncadd [#allocation6], %s40
      %s42 = sshll.u32 [#allocation7], 4
      %s43 = int_to_ptr.vmem [resolvable:$true] %s42
      %48 = dma.hbm_to_vmem [thread:$0]  %s3, 2048, %s43, [#allocation6], 64, 64, 4
    $region17: #{tpu_custom_call.1} parent=1 // pred_fallthru
      _
    // Predicated region
    $region18: #{tpu_custom_call.1} parent=1 // pred_check
      _
    $region19: #{tpu_custom_call.1} parent=1 // pred_check_branch
      %50 = sbr.rel (0) target = $region21
    $region20: #{tpu_custom_call.1} parent=1 // pred_region
      _
    $region21: #{tpu_custom_call.1} parent=1 // pred_fallthru
      _
    // Predicated region
    $region22: #{tpu_custom_call.1} parent=1 // pred_check
      _
    $region23: #{tpu_custom_call.1} parent=1 // pred_check_branch
      %52 = sbr.rel (0) target = $region25
    $region24: #{tpu_custom_call.1} parent=1 // pred_region
      %53 = dma.done [#allocation3], 128
    $region25: #{tpu_custom_call.1} parent=1 // pred_fallthru
      _
    // Predicated region
    $region26: #{tpu_custom_call.1} parent=1 // pred_check
      _
    $region27: #{tpu_custom_call.1} parent=1 // pred_check_branch
      %55 = sbr.rel (0) target = $region29
    $region28: #{tpu_custom_call.1} parent=1 // pred_region
      %56 = dma.done [#allocation6], 2048
    $region29: #{tpu_custom_call.1} parent=1 // pred_fallthru
      _
    // Predicated region
    $region30: #{tpu_custom_call.1} parent=1 // pred_check
      _
    $region31: #{tpu_custom_call.1} parent=1 // pred_check_branch
      %58 = sbr.rel (0) target = $region33
    $region32: #{tpu_custom_call.1} parent=1 // pred_region
      %59 = dma.done [#allocation6], 2048
    $region33: #{tpu_custom_call.1} parent=1 // pred_fallthru
      _
    %v61 = vld [vmem:[#allocation2] sm:$0xff]
    %v62 = vpack.c.bf16 %v61, %v61
    %v63 = vld [vmem:[#allocation5] sm:$0xff]
    %v64 = vld [vmem:[#allocation5 + $0x8] sm:$0xff]
    %v65 = vld [vmem:[#allocation5 + $0x10] sm:$0xff]
    %v66 = vld [vmem:[#allocation5 + $0x18] sm:$0xff]
    %v67 = vld [vmem:[#allocation5 + $0x20] sm:$0xff]
    %v68 = vld [vmem:[#allocation5 + $0x28] sm:$0xff]
    %v69 = vld [vmem:[#allocation5 + $0x30] sm:$0xff]
    %v70 = vld [vmem:[#allocation5 + $0x38] sm:$0xff]
    %v71 = vld [vmem:[#allocation5 + $0x40] sm:$0xff]
    %v72 = vld [vmem:[#allocation5 + $0x48] sm:$0xff]
    %v73 = vld [vmem:[#allocation5 + $0x50] sm:$0xff]
    %v74 = vld [vmem:[#allocation5 + $0x58] sm:$0xff]
    %v75 = vld [vmem:[#allocation5 + $0x60] sm:$0xff]
    %v76 = vld [vmem:[#allocation5 + $0x68] sm:$0xff]
    %v77 = vld [vmem:[#allocation5 + $0x70] sm:$0xff]
    %v78 = vld [vmem:[#allocation5 + $0x78] sm:$0xff]
    %v79 = vld [vmem:[%s2] sm:$0x3]
    %v81 = vlaneseq
    %v82 = vshrl.u32 %v81, 7
    %v83 = vsub.s32 0, %v82
    %v84 = vrot.slane %v79, %v83
    %v85 = vlaneseq
    %v86 = vshrl.u32 %v85, 7
    %v87 = vsub.s32 1, %v86
    %v88 = vrot.slane %v79, %v87
    %v107 = vunpack.c.l.b16 %v63
    %v108 = vunpack.c.h.b16 %v63
    %v109 = vunpack.c.l.b16 %v64
    %v110 = vunpack.c.h.b16 %v64
    %v111 = vunpack.c.l.b16 %v65
    %v112 = vunpack.c.h.b16 %v65
    %v113 = vunpack.c.l.b16 %v66
    %v114 = vunpack.c.h.b16 %v66
    %v115 = vunpack.c.l.b16 %v67
    %v116 = vunpack.c.h.b16 %v67
    %v117 = vunpack.c.l.b16 %v68
    %v118 = vunpack.c.h.b16 %v68
    %v119 = vunpack.c.l.b16 %v69
    %v120 = vunpack.c.h.b16 %v69
    %v121 = vunpack.c.l.b16 %v70
    %v122 = vunpack.c.h.b16 %v70
    %v123 = vunpack.c.l.b16 %v71
    %v124 = vunpack.c.h.b16 %v71
    %v125 = vunpack.c.l.b16 %v72
    %v126 = vunpack.c.h.b16 %v72
    %v127 = vunpack.c.l.b16 %v73
    %v128 = vunpack.c.h.b16 %v73
    %v129 = vunpack.c.l.b16 %v74
    %v130 = vunpack.c.h.b16 %v74
    %v131 = vunpack.c.l.b16 %v75
    %v132 = vunpack.c.h.b16 %v75
    %v133 = vunpack.c.l.b16 %v76
    %v134 = vunpack.c.h.b16 %v76
    %v135 = vunpack.c.l.b16 %v77
    %v136 = vunpack.c.h.b16 %v77
    %v137 = vunpack.c.l.b16 %v78
    %v138 = vunpack.c.h.b16 %v78
    %v139 = vpack.c.b16 %v109, %v107
    %v140 = vpack.c.b16 %v110, %v108
    %v141 = vpack.c.b16 %v113, %v111
    %v142 = vpack.c.b16 %v114, %v112
    %v143 = vpack.c.b16 %v117, %v115
    %v144 = vpack.c.b16 %v118, %v116
    %v145 = vpack.c.b16 %v121, %v119
    %v146 = vpack.c.b16 %v122, %v120
    %v147 = vpack.c.b16 %v125, %v123
    %v148 = vpack.c.b16 %v126, %v124
    %v149 = vpack.c.b16 %v129, %v127
    %v150 = vpack.c.b16 %v130, %v128
    %v151 = vpack.c.b16 %v133, %v131
    %v152 = vpack.c.b16 %v134, %v132
    %v153 = vpack.c.b16 %v137, %v135
    %v154 = vpack.c.b16 %v138, %v136
    %171 = vmatprep.subr.bf16.mxu0 %v140
    %172 = vmatpush1.bf16.msra.mxu0 %v139
    %173 = vmatprep.subr.bf16.mxu0 %v142
    %174 = vmatpush1.bf16.msra.mxu0 %v141
    %175 = vmatprep.subr.bf16.mxu0 %v144
    %176 = vmatpush1.bf16.msra.mxu0 %v143
    %177 = vmatprep.subr.bf16.mxu0 %v146
    %178 = vmatpush1.bf16.msra.mxu0 %v145
    %179 = vmatprep.subr.bf16.mxu0 %v148
    %180 = vmatpush1.bf16.msra.mxu0 %v147
    %181 = vmatprep.subr.bf16.mxu0 %v150
    %182 = vmatpush1.bf16.msra.mxu0 %v149
    %183 = vmatprep.subr.bf16.mxu0 %v152
    %184 = vmatpush1.bf16.msra.mxu0 %v151
    %185 = vmatprep.subr.bf16.mxu0 %v154
    %186 = vmatpush1.bf16.msra.mxu0 %v153
    %187 = vmatprep.subr.bf16.mxu0 0
    %188 = vmatpush1.bf16.msra.mxu0 0
    %189 = vmatprep.subr.bf16.mxu0 0
    %190 = vmatpush1.bf16.msra.mxu0 0
    %191 = vmatprep.subr.bf16.mxu0 0
    %192 = vmatpush1.bf16.msra.mxu0 0
    %193 = vmatprep.subr.bf16.mxu0 0
    %194 = vmatpush1.bf16.msra.mxu0 0
    %195 = vmatprep.subr.bf16.mxu0 0
    %196 = vmatpush1.bf16.msra.mxu0 0
    %197 = vmatprep.subr.bf16.mxu0 0
    %198 = vmatpush1.bf16.msra.mxu0 0
    %199 = vmatprep.subr.bf16.mxu0 0
    %200 = vmatpush1.bf16.msra.mxu0 0
    %201 = vmatprep.subr.bf16.mxu0 0
    %202 = vmatpush1.bf16.msra.mxu0 0
    %203 = vmatprep.mubr.bf16.mxu0 0
    %204 = vmatmul.mubr.bf16.gmra.mrb[0].mxu0 %v62
    %v205 = vpop.f32.mrb[0].mxu0
    %v206 = vadd.f32 %v84, %v205
    %v207 = vpop.f32.mrb[0].mxu0
    %v208 = vadd.f32 %v88, %v207
    %v209 = vpop.f32.mrb[0].mxu0
    %v210 = vpop.f32.mrb[0].mxu0
    %211 = vdwg.mxu0
    %v212 = vmax.f32 %v206, 0.0
    %v213 = vmax.f32 %v208, 0.0
    %v214 = vpack.c.bf16 %v212, %v212
    %v215 = vpack.c.bf16 %v213, %v213
    %v216 = vld [vmem:[#allocation7] sm:$0xf]
    %v217 = vld [vmem:[#allocation7 + $0x4] sm:$0xf]
    %v218 = vld [vmem:[#allocation7 + $0x8] sm:$0xf]
    %v219 = vld [vmem:[#allocation7 + $0xc] sm:$0xf]
    %v220 = vld [vmem:[#allocation7 + $0x10] sm:$0xf]
    %v221 = vld [vmem:[#allocation7 + $0x14] sm:$0xf]
    %v222 = vld [vmem:[#allocation7 + $0x18] sm:$0xf]
    %v223 = vld [vmem:[#allocation7 + $0x1c] sm:$0xf]
    %v224 = vld [vmem:[#allocation7 + $0x20] sm:$0xf]
    %v225 = vld [vmem:[#allocation7 + $0x24] sm:$0xf]
    %v226 = vld [vmem:[#allocation7 + $0x28] sm:$0xf]
    %v227 = vld [vmem:[#allocation7 + $0x2c] sm:$0xf]
    %v228 = vld [vmem:[#allocation7 + $0x30] sm:$0xf]
    %v229 = vld [vmem:[#allocation7 + $0x34] sm:$0xf]
    %v230 = vld [vmem:[#allocation7 + $0x38] sm:$0xf]
    %v231 = vld [vmem:[#allocation7 + $0x3c] sm:$0xf]
    %v232 = vld [vmem:[#allocation7 + $0x40] sm:$0xf]
    %v233 = vld [vmem:[#allocation7 + $0x44] sm:$0xf]
    %v234 = vld [vmem:[#allocation7 + $0x48] sm:$0xf]
    %v235 = vld [vmem:[#allocation7 + $0x4c] sm:$0xf]
    %v236 = vld [vmem:[#allocation7 + $0x50] sm:$0xf]
    %v237 = vld [vmem:[#allocation7 + $0x54] sm:$0xf]
    %v238 = vld [vmem:[#allocation7 + $0x58] sm:$0xf]
    %v239 = vld [vmem:[#allocation7 + $0x5c] sm:$0xf]
    %v240 = vld [vmem:[#allocation7 + $0x60] sm:$0xf]
    %v241 = vld [vmem:[#allocation7 + $0x64] sm:$0xf]
    %v242 = vld [vmem:[#allocation7 + $0x68] sm:$0xf]
    %v243 = vld [vmem:[#allocation7 + $0x6c] sm:$0xf]
    %v244 = vld [vmem:[#allocation7 + $0x70] sm:$0xf]
    %v245 = vld [vmem:[#allocation7 + $0x74] sm:$0xf]
    %v246 = vld [vmem:[#allocation7 + $0x78] sm:$0xf]
    %v247 = vld [vmem:[#allocation7 + $0x7c] sm:$0xf]
    %v248 = vld [vmem:[%s4] sm:$0x1]
    %v250 = vlaneseq
    %v251 = vshrl.u32 %v250, 7
    %v252 = vsub.s32 0, %v251
    %v253 = vrot.slane %v248, %v252
    %v287 = vunpack.c.l.b16 %v216
    %v288 = vunpack.c.l.b16 %v217
    %v289 = vunpack.c.l.b16 %v218
    %v290 = vunpack.c.l.b16 %v219
    %v291 = vunpack.c.l.b16 %v220
    %v292 = vunpack.c.l.b16 %v221
    %v293 = vunpack.c.l.b16 %v222
    %v294 = vunpack.c.l.b16 %v223
    %v295 = vunpack.c.l.b16 %v224
    %v296 = vunpack.c.l.b16 %v225
    %v297 = vunpack.c.l.b16 %v226
    %v298 = vunpack.c.l.b16 %v227
    %v299 = vunpack.c.l.b16 %v228
    %v300 = vunpack.c.l.b16 %v229
    %v301 = vunpack.c.l.b16 %v230
    %v302 = vunpack.c.l.b16 %v231
    %v303 = vunpack.c.l.b16 %v232
    %v304 = vunpack.c.l.b16 %v233
    %v305 = vunpack.c.l.b16 %v234
    %v306 = vunpack.c.l.b16 %v235
    %v307 = vunpack.c.l.b16 %v236
    %v308 = vunpack.c.l.b16 %v237
    %v309 = vunpack.c.l.b16 %v238
    %v310 = vunpack.c.l.b16 %v239
    %v311 = vunpack.c.l.b16 %v240
    %v312 = vunpack.c.l.b16 %v241
    %v313 = vunpack.c.l.b16 %v242
    %v314 = vunpack.c.l.b16 %v243
    %v315 = vunpack.c.l.b16 %v244
    %v316 = vunpack.c.l.b16 %v245
    %v317 = vunpack.c.l.b16 %v246
    %v318 = vunpack.c.l.b16 %v247
    %v319 = vpack.c.b16 %v288, %v287
    %v320 = vpack.c.b16 %v290, %v289
    %v321 = vpack.c.b16 %v292, %v291
    %v322 = vpack.c.b16 %v294, %v293
    %v323 = vpack.c.b16 %v296, %v295
    %v324 = vpack.c.b16 %v298, %v297
    %v325 = vpack.c.b16 %v300, %v299
    %v326 = vpack.c.b16 %v302, %v301
    %v327 = vpack.c.b16 %v304, %v303
    %v328 = vpack.c.b16 %v306, %v305
    %v329 = vpack.c.b16 %v308, %v307
    %v330 = vpack.c.b16 %v310, %v309
    %v331 = vpack.c.b16 %v312, %v311
    %v332 = vpack.c.b16 %v314, %v313
    %v333 = vpack.c.b16 %v316, %v315
    %v334 = vpack.c.b16 %v318, %v317
    %351 = vmatprep.subr.bf16.mxu0 0
    %352 = vmatpush1.bf16.msra.mxu0 %v319
    %353 = vmatprep.subr.bf16.mxu0 0
    %354 = vmatpush1.bf16.msra.mxu0 %v320
    %355 = vmatprep.subr.bf16.mxu0 0
    %356 = vmatpush1.bf16.msra.mxu0 %v321
    %357 = vmatprep.subr.bf16.mxu0 0
    %358 = vmatpush1.bf16.msra.mxu0 %v322
    %359 = vmatprep.subr.bf16.mxu0 0
    %360 = vmatpush1.bf16.msra.mxu0 %v323
    %361 = vmatprep.subr.bf16.mxu0 0
    %362 = vmatpush1.bf16.msra.mxu0 %v324
    %363 = vmatprep.subr.bf16.mxu0 0
    %364 = vmatpush1.bf16.msra.mxu0 %v325
    %365 = vmatprep.subr.bf16.mxu0 0
    %366 = vmatpush1.bf16.msra.mxu0 %v326
    %367 = vmatprep.subr.bf16.mxu0 0
    %368 = vmatpush1.bf16.msra.mxu0 %v327
    %369 = vmatprep.subr.bf16.mxu0 0
    %370 = vmatpush1.bf16.msra.mxu0 %v328
    %371 = vmatprep.subr.bf16.mxu0 0
    %372 = vmatpush1.bf16.msra.mxu0 %v329
    %373 = vmatprep.subr.bf16.mxu0 0
    %374 = vmatpush1.bf16.msra.mxu0 %v330
    %375 = vmatprep.subr.bf16.mxu0 0
    %376 = vmatpush1.bf16.msra.mxu0 %v331
    %377 = vmatprep.subr.bf16.mxu0 0
    %378 = vmatpush1.bf16.msra.mxu0 %v332
    %379 = vmatprep.subr.bf16.mxu0 0
    %380 = vmatpush1.bf16.msra.mxu0 %v333
    %381 = vmatprep.subr.bf16.mxu0 0
    %382 = vmatpush1.bf16.msra.mxu0 %v334
    %383 = vmatprep.mubr.bf16.mxu0 %v215
    %384 = vmatmul.mubr.bf16.gmra.mrb[0].mxu0 %v214
    %v385 = vpop.f32.mrb[0].mxu0
    %v386 = vadd.f32 %v253, %v385
    %v387 = vpop.f32.mrb[0].mxu0
    %v388 = vpop.f32.mrb[0].mxu0
    %v389 = vpop.f32.mrb[0].mxu0
    %390 = vdwg.mxu0
    %v391 = vpack.c.bf16 %v386, %v386
    %392 = vst [vmem:[#allocation8] sm:$0xf] %v391
    // Predicated region
    $region34: #{tpu_custom_call.1} parent=1 // pred_check
      _
    $region35: #{tpu_custom_call.1} parent=1 // pred_check_branch
      %394 = sbr.rel (0) target = $region37
    $region36: #{tpu_custom_call.1} parent=1 // pred_region
      %s396 = ssub.s32 64, 64
      %397 = vsyncadd [#allocation4], %s396
      %s399 = sshll.u32 [#allocation8], 4
      %s400 = int_to_ptr.vmem [resolvable:$true] %s399
      %402 = dma.vmem_to_hbm [thread:$0]  %s400, 64, %s5, [#allocation4]
    $region37: #{tpu_custom_call.1} parent=1 // pred_fallthru
      _
    // Predicated region
    $region38: #{tpu_custom_call.1} parent=1 // pred_check
      _
    $region39: #{tpu_custom_call.1} parent=1 // pred_check_branch
      %404 = sbr.rel (0) target = $region41
    $region40: #{tpu_custom_call.1} parent=1 // pred_region
      %405 = dma.done [#allocation4], 64
    $region41: #{tpu_custom_call.1} parent=1 // pred_fallthru
      _
    %406 = vsyncpa [#allocation3], 1
    %407 = vsyncpa [#allocation6], 1
    %408 = vsyncpa [#allocation4], 1

</llo_original>
